<compile_context>
chip_gen: v6e
topology: v6e:2x2x1
jax: 0.10.0
libtpu: 0.0.40
codegen_flags: <defaults>
</compile_context>

<pallas_src>
import jax
import jax.numpy as jnp
from jax.experimental import pallas as pl
from jax.experimental.pallas import tpu as pltpu


def _ldt_loss_kernel(x_ref, delta_ref, tgt_ref, loss_ref):
    x = x_ref[...].astype(jnp.float32)            # [TM, C]  (bf16 input upcast in-kernel)
    delta = delta_ref[...].astype(jnp.float32)    # [1, C]   grid-invariant, stays resident
    tgt = tgt_ref[...]                            # [TM, 1]  int32

    tm, c = x.shape
    col = jax.lax.broadcasted_iota(jnp.int32, (tm, c), 1)
    is_tgt = col == tgt                           # [TM, C] bool

    # per-sample temperature Delta_list[target]: select + lane-reduce (no dynamic gather).
    scale = jnp.sum(jnp.where(is_tgt, delta, 0.0), axis=-1, keepdims=True)   # [TM, 1]

    # LDT scaling: each row of x multiplied by its target-class delta.
    scaled = x * scale                            # [TM, C]

    # numerically stable log-softmax denominator
    m = jnp.max(scaled, axis=-1, keepdims=True)                              # [TM, 1]
    lse = jnp.log(jnp.sum(jnp.exp(scaled - m), axis=-1, keepdims=True)) + m  # [TM, 1]

    # scaled logit of the target class (select + reduce, no one-hot multiply)
    picked = jnp.sum(jnp.where(is_tgt, scaled, 0.0), axis=-1, keepdims=True)  # [TM, 1]

    loss_ref[...] = lse - picked                  # per-sample NLL
    # TODO(synk): per-class `weight` (None in this config) and F.cross_entropy's
    # ignore_index=-100 semantics are not implemented.


def _round_up(v, m):
    return ((v + m - 1) // m) * m


def ldt_loss(x, target, delta_list, gamma=0.5, reduction=None, block_rows=512):
    """Pallas implementation of LDTLoss.forward.

    x:          [N, C] float logits (f32 or bf16)
    target:     [N]    int class indices
    delta_list: [C]    per-class Delta values (the __init__ arg)
    """
    n, c = x.shape

    # Delta_list preprocessing from LDTLoss.__init__ (plain JAX glue, O(C)):
    delta = jnp.power(delta_list.astype(jnp.float32), gamma)
    delta = delta.shape[0] * delta / jnp.sum(delta)
    delta = delta.reshape(1, c)

    # Row-tile selection: keep the (double-buffered) x tile well under scoped VMEM,
    # multiples of 8 sublanes, full class dim per block.
    itemsize = jnp.dtype(x.dtype).itemsize
    max_rows_by_vmem = max(8, (4 * 1024 * 1024) // max(1, c * itemsize))
    tm = min(int(block_rows), int(max_rows_by_vmem), _round_up(n, 8))
    tm = max(8, (tm // 8) * 8)

    n_pad = _round_up(n, tm)
    if n_pad != n:
        x = jnp.pad(x, ((0, n_pad - n), (0, 0)))
        target = jnp.pad(target, (0, n_pad - n))
    tgt = target.astype(jnp.int32).reshape(n_pad, 1)
    num_blocks = n_pad // tm

    cost = pl.CostEstimate(
        flops=6 * n_pad * c,
        transcendentals=n_pad * c,
        bytes_accessed=n_pad * c * itemsize + n_pad * 4 + c * 4 + n_pad * 4,
    )

    per_sample = pl.pallas_call(
        _ldt_loss_kernel,
        out_shape=jax.ShapeDtypeStruct((n_pad, 1), jnp.float32),
        grid_spec=pltpu.PrefetchScalarGridSpec(
            num_scalar_prefetch=0,
            grid=(num_blocks,),
            in_specs=[
                pl.BlockSpec((tm, c), lambda i: (i, 0)),   # x row tile
                pl.BlockSpec((1, c), lambda i: (0, 0)),    # delta (same block every step)
                pl.BlockSpec((tm, 1), lambda i: (i, 0)),   # targets
            ],
            out_specs=pl.BlockSpec((tm, 1), lambda i: (i, 0)),
        ),
        compiler_params=pltpu.CompilerParams(
            dimension_semantics=("parallel",),
            vmem_limit_bytes=32 * 1024 * 1024,
        ),
        cost_estimate=cost,
    )(x, delta, tgt)

    valid = per_sample[:n, 0]     # drop padded rows; normalize by the true global N
    total = jnp.sum(valid)
    if reduction == "sum":
        return total
    return total / jnp.float32(n)


def _reference(x, target, delta_list, gamma=0.5, reduction=None):
    # pure-JAX reference for sanity checking (mirrors the PyTorch forward)
    delta = jnp.power(delta_list.astype(jnp.float32), gamma)
    delta = delta.shape[0] * delta / jnp.sum(delta)
    scale = jnp.take(delta, target.astype(jnp.int32))          # Delta_list[target]
    scaled = x.astype(jnp.float32) * scale[:, None]
    logp = jax.nn.log_softmax(scaled, axis=-1)
    nll = -jnp.take_along_axis(logp, target[:, None].astype(jnp.int32), axis=-1)[:, 0]
    return jnp.sum(nll) if reduction == "sum" else jnp.mean(nll)


if __name__ == "__main__":
    key = jax.random.PRNGKey(0)
    kx, kt, kx2, kt2 = jax.random.split(key, 4)

    # case 1: batch=8, classes=16 (single grid step), mean and sum reductions
    N, C = 8, 16
    x = jax.random.normal(kx, (N, C), dtype=jnp.float32)
    target = jax.random.randint(kt, (N,), 0, C, dtype=jnp.int32)
    delta_list = jnp.arange(1, C + 1, dtype=jnp.float32)

    loss_mean = ldt_loss(x, target, delta_list, gamma=0.5, reduction=None)
    loss_sum = ldt_loss(x, target, delta_list, gamma=0.5, reduction="sum")
    jax.block_until_ready((loss_mean, loss_sum))

    ref_mean = _reference(x, target, delta_list, gamma=0.5, reduction=None)
    ref_sum = _reference(x, target, delta_list, gamma=0.5, reduction="sum")
    assert jnp.allclose(loss_mean, ref_mean, rtol=1e-5, atol=1e-5), (loss_mean, ref_mean)
    assert jnp.allclose(loss_sum, ref_sum, rtol=1e-5, atol=1e-5), (loss_sum, ref_sum)

    # case 2: ragged batch (N % TM != 0) + multi-block 'parallel' grid
    N2, C2 = 40, 128
    x2 = jax.random.normal(kx2, (N2, C2), dtype=jnp.float32)
    target2 = jax.random.randint(kt2, (N2,), 0, C2, dtype=jnp.int32)
    delta_list2 = jnp.arange(1, C2 + 1, dtype=jnp.float32)

    loss2 = ldt_loss(x2, target2, delta_list2, gamma=0.5, reduction=None, block_rows=16)
    jax.block_until_ready(loss2)
    ref2 = _reference(x2, target2, delta_list2, gamma=0.5, reduction=None)
    assert jnp.allclose(loss2, ref2, rtol=1e-4, atol=1e-4), (loss2, ref2)

    print("KERNEL_OK")
</pallas_src>

<mosaic_0001>
module attributes {stable_mosaic.version = 11 : i64} {
  func.func @_ldt_loss_kernel(%arg0: i32, %arg1: memref<8x16xf32, #tpu.memory_space<vmem>>, %arg2: memref<1x16xf32, #tpu.memory_space<vmem>>, %arg3: memref<8x1xi32, #tpu.memory_space<vmem>>, %arg4: memref<8x1xf32, #tpu.memory_space<vmem>>) attributes {dimension_semantics = [#tpu.dimension_semantics<parallel>], iteration_bounds = array<i64: 1>, scalar_prefetch = 0 : i64, scratch_operands = 0 : i64, tpu.core_type = #tpu.core_type<tc>, window_params = [{transform_indices = @transform_0, window_bounds = array<i64: 8, 16>}, {pipeline_mode = #tpu.pipeline_mode<synchronous>, transform_indices = @transform_1, window_bounds = array<i64: 1, 16>}, {transform_indices = @transform_2, window_bounds = array<i64: 8, 1>}, {transform_indices = @transform_3, window_bounds = array<i64: 8, 1>}]} {
    %c0 = arith.constant 0 : index
    %c0_0 = arith.constant 0 : index
    %0 = vector.load %arg1[%c0, %c0_0] : memref<8x16xf32, #tpu.memory_space<vmem>>, vector<8x16xf32>
    %c0_1 = arith.constant 0 : index
    %c0_2 = arith.constant 0 : index
    %1 = vector.load %arg2[%c0_1, %c0_2] : memref<1x16xf32, #tpu.memory_space<vmem>>, vector<1x16xf32>
    %c0_3 = arith.constant 0 : index
    %c0_4 = arith.constant 0 : index
    %2 = vector.load %arg3[%c0_3, %c0_4] : memref<8x1xi32, #tpu.memory_space<vmem>>, vector<8x1xi32>
    %3 = tpu.iota {dimensions = array<i32: 1>} : vector<8x16xi32>
    %4 = vector.broadcast %2 : vector<8x1xi32> to vector<8x16xi32>
    %5 = arith.cmpi eq, %3, %4 : vector<8x16xi32>
    %cst = arith.constant 0.000000e+00 : f32
    %6 = vector.shape_cast %1 : vector<1x16xf32> to vector<1x16xf32>
    %7 = vector.broadcast %6 : vector<1x16xf32> to vector<8x16xf32>
    %8 = vector.broadcast %cst : f32 to vector<8x16xf32>
    %9 = arith.select %5, %7, %8 : vector<8x16xi1>, vector<8x16xf32>
    %cst_5 = arith.constant dense<0.000000e+00> : vector<8xf32>
    %10 = vector.multi_reduction <add>, %9, %cst_5 [1] : vector<8x16xf32> to vector<8xf32>
    %11 = vector.shape_cast %10 : vector<8xf32> to vector<8x1xf32>
    %12 = vector.broadcast %11 : vector<8x1xf32> to vector<8x16xf32>
    %13 = arith.mulf %0, %12 : vector<8x16xf32>
    %cst_6 = arith.constant dense<0xFF800000> : vector<8xf32>
    %14 = vector.multi_reduction <maximumf>, %13, %cst_6 [1] : vector<8x16xf32> to vector<8xf32>
    %15 = vector.shape_cast %14 : vector<8xf32> to vector<8x1xf32>
    %16 = vector.broadcast %15 : vector<8x1xf32> to vector<8x16xf32>
    %17 = arith.subf %13, %16 : vector<8x16xf32>
    %18 = math.exp %17 : vector<8x16xf32>
    %cst_7 = arith.constant dense<0.000000e+00> : vector<8xf32>
    %19 = vector.multi_reduction <add>, %18, %cst_7 [1] : vector<8x16xf32> to vector<8xf32>
    %20 = vector.shape_cast %19 : vector<8xf32> to vector<8x1xf32>
    %21 = math.log %20 : vector<8x1xf32>
    %22 = arith.addf %21, %15 : vector<8x1xf32>
    %cst_8 = arith.constant 0.000000e+00 : f32
    %23 = vector.broadcast %cst_8 : f32 to vector<8x16xf32>
    %24 = arith.select %5, %13, %23 : vector<8x16xi1>, vector<8x16xf32>
    %cst_9 = arith.constant dense<0.000000e+00> : vector<8xf32>
    %25 = vector.multi_reduction <add>, %24, %cst_9 [1] : vector<8x16xf32> to vector<8xf32>
    %26 = vector.shape_cast %25 : vector<8xf32> to vector<8x1xf32>
    %27 = arith.subf %22, %26 : vector<8x1xf32>
    %c0_10 = arith.constant 0 : index
    %c0_11 = arith.constant 0 : index
    %28 = vector.load %arg4[%c0_10, %c0_11] : memref<8x1xf32, #tpu.memory_space<vmem>>, vector<8x1xf32>
    tpu.vector_store %arg4[%c0_10, %c0_11], %27 {strides = array<i32>} : memref<8x1xf32, #tpu.memory_space<vmem>>, vector<8x1xf32>,
    return
  }
  func.func @transform_0(%arg0: i32) -> (i32, i32) {
    %c0_i32 = arith.constant 0 : i32
    %c0_i32_0 = arith.constant 0 : i32
    return %arg0, %c0_i32 : i32, i32
  }
  func.func @transform_1(%arg0: i32) -> (i32, i32) {
    %c0_i32 = arith.constant 0 : i32
    %c0_i32_0 = arith.constant 0 : i32
    %c0_i32_1 = arith.constant 0 : i32
    return %c0_i32, %c0_i32_0 : i32, i32
  }
  func.func @transform_2(%arg0: i32) -> (i32, i32) {
    %c0_i32 = arith.constant 0 : i32
    %c0_i32_0 = arith.constant 0 : i32
    return %arg0, %c0_i32 : i32, i32
  }
  func.func @transform_3(%arg0: i32) -> (i32, i32) {
    %c0_i32 = arith.constant 0 : i32
    %c0_i32_0 = arith.constant 0 : i32
    return %arg0, %c0_i32 : i32, i32
  }
}

</mosaic_0001>

<llo_original>
// kernel: tpu_custom_call.1
$region0: #{tpu_custom_call.1}
  #allocation0 [shape = 'u32[]', space=smem, size = 0x4, offset = 0x4, fixed_abs, tag = 'smem constant byte address 0x4 - core index']
  #allocation1 [shape = 'u32[144,128]{1,0:T(1,128)}', space=vmem, size = 0x12000, scoped, tag = 'internal scratch']
  %s0 = inlined_call_operand.vmem [shape: f32[8,16], index: 0, kind: input, shape index: {}]
  %s1 = inlined_call_operand.vmem [shape: f32[1,16], index: 1, kind: input, shape index: {}]
  %s2 = inlined_call_operand.vmem [shape: s32[8,1], index: 2, kind: input, shape index: {}]
  %s3 = inlined_call_operand.vmem [shape: f32[8,1], index: 3, kind: output, shape index: {}]
  %s4 = sld [smem:[#allocation0]]
  $region22: #{tpu_custom_call.1} parent=0
    _
  %s6 = ssub.s32 1, %s4
  %s7 = scalar_select 0, %s6, %s4
  // Predicated region
  $region2: #{tpu_custom_call.1} parent=0 // pred_check
    _
  $region3: #{tpu_custom_call.1} parent=0 // pred_check_branch
    %9 = sbr.rel (0) target = $region5
  $region4: #{tpu_custom_call.1} parent=0 // pred_region
    _
  $region5: #{tpu_custom_call.1} parent=0 // pred_fallthru
    _
  // Predicated region
  $region6: #{tpu_custom_call.1} parent=0 // pred_check
    _
  $region7: #{tpu_custom_call.1} parent=0 // pred_check_branch
    %11 = sbr.rel (0) target = $region9
  $region8: #{tpu_custom_call.1} parent=0 // pred_region
    _
  $region9: #{tpu_custom_call.1} parent=0 // pred_fallthru
    _
  // Predicated region
  $region10: #{tpu_custom_call.1} parent=0 // pred_check
    _
  $region11: #{tpu_custom_call.1} parent=0 // pred_check_branch
    %13 = sbr.rel (0) target = $region13
  $region12: #{tpu_custom_call.1} parent=0 // pred_region
    _
  $region13: #{tpu_custom_call.1} parent=0 // pred_fallthru
    _
  %v14 = vld [vmem:[%s0] sm:$0xff]
  %v15 = vld [vmem:[%s1] sm:$0x1]
  %v16 = vld [vmem:[%s2] sm:$0xff]
  %v17 = vlaneseq
  %v18 = vand.u32 %v17, 127
  %19 = vset.pattern.permute.xlu0 0
  %20 = vperm.xlu0 %19, %v16
  %v21 = vpop.permute.xlu0 %20
  %vm22 = vcmp.eq.s32.totalorder %v18, %v21
  %v24 = vlaneseq
  %v25 = vshrl.u32 %v24, 7
  %v26 = vsub.s32 0, %v25
  %v27 = vrot.slane %v15, %v26
  %v29 = vsel %vm22, %v27, 0.0
  %vm30 = vcmask 130048
  %v31 = vsel %vm30, %v29, 0.0
  %32 = vadd.xlane.f32.xlu0 %v31
  %v33 = vpop.xlane.xlu0 %32
  %v34 = vmul.f32 %v14, %v33
  %v35 = vsel %vm30, %v34, -inf
  %36 = vmax.xlane.f32.xlu0 %v35
  %v37 = vpop.xlane.xlu0 %36
  %v38 = vsub.f32 %v34, %v37
  %v39 = vmul.f32 %v38, 1.442695
  %v40 = vpow.pop %v39
  %v41 = vsel %vm30, %v40, 0.0
  %42 = vadd.xlane.f32.xlu0 %v41
  %v43 = vpop.xlane.xlu0 %42
  %v44 = vlog2.pop %v43
  %v45 = vmul.f32 %v44, 0.6931472
  %v46 = vadd.f32 %v45, %v37
  %v47 = vsel %vm22, %v34, 0.0
  %v48 = vsel %vm30, %v47, 0.0
  %49 = vadd.xlane.f32.xlu0 %v48
  %v50 = vpop.xlane.xlu0 %49
  %v51 = vsub.f32 %v46, %v50
  %vm52 = vcmask 7168
  %53 = vst.msk [vmem:[%s3] sm:$0xff] %vm52, %v51
  // Predicated region
  $region14: #{tpu_custom_call.1} parent=0 // pred_check
    _
  $region15: #{tpu_custom_call.1} parent=0 // pred_check_branch
    %55 = sbr.rel (0) target = $region17
  $region16: #{tpu_custom_call.1} parent=0 // pred_region
    _
  $region17: #{tpu_custom_call.1} parent=0 // pred_fallthru
    _
  // Predicated region
  $region18: #{tpu_custom_call.1} parent=0 // pred_check
    _
  $region19: #{tpu_custom_call.1} parent=0 // pred_check_branch
    %57 = sbr.rel (0) target = $region21
  $region20: #{tpu_custom_call.1} parent=0 // pred_region
    _
  $region21: #{tpu_custom_call.1} parent=0 // pred_fallthru
    _

</llo_original>
